<compile_context>
chip_gen: v6e
topology: v6e:2x2x1
jax: 0.10.0
libtpu: 0.0.40
codegen_flags: <defaults>
</compile_context>

<pallas_src>
import functools
import math

import jax
import jax.numpy as jnp
from jax import lax
from jax.experimental import pallas as pl
from jax.experimental.pallas import tpu as pltpu


def _round_up(x, m):
    return (x + m - 1) // m * m


# ---------------------------------------------------------------------------
# Fused kernel
# ---------------------------------------------------------------------------
def _moco_fused_kernel(q_ref, k_ref, mem_ref, lpos_ref, lneg_ref, *, inv_temp):
    """One queue tile of the MoCo logits.

    q_ref:    [B, D]   resident across the grid
    k_ref:    [B, D]   resident across the grid
    mem_ref:  [TQ, D]  streamed (double-buffered by the Pallas pipeline)
    lpos_ref: [B, 1]   resident output block (same block every step)
    lneg_ref: [B, TQ]  lane-dense output tile for this grid step
    """
    # l_pos: trivially cheap (B*D VPU + one lane reduce), recomputed every
    # step and written to the resident [B, 1] block.  Every step (and, under
    # v7x megacore sharding of the "parallel" axis, every core) writes the
    # identical value, so the duplicate writeback is benign.
    qf = q_ref[...].astype(jnp.float32)
    kf = k_ref[...].astype(jnp.float32)
    lpos_ref[...] = (jnp.sum(qf * kf, axis=-1, keepdims=True)
                     * inv_temp).astype(lpos_ref.dtype)

    # l_neg tile: NT contraction (feature dim of both operands) straight on
    # the MXU with f32 accumulation; 1/T is applied to the f32 accumulator so
    # low-precision queue/logits configs do not quantize a scaled q.
    # TODO(synk): confirm via pl.lower_as_mlir on each generation that this NT
    # dot_general stays transpose-free (same contraction pattern as the
    # reference flash-attention kernels); if a vxpose ever shows up, switch to
    # [D, Q] queue storage and a plain NN dot.
    qm = q_ref[...].astype(mem_ref.dtype)
    acc = lax.dot_general(
        qm, mem_ref[...],
        dimension_numbers=(((1,), (1,)), ((), ())),
        preferred_element_type=jnp.float32,
    )
    lneg_ref[...] = (acc * inv_temp).astype(lneg_ref.dtype)


# ---------------------------------------------------------------------------
# Tile selection
# ---------------------------------------------------------------------------
def _pick_queue_tile(Q, D, B, mem_bytes, out_bytes, *, block_q,
                     vmem_budget_bytes, min_grid_steps):
    tq = max(128, min(_round_up(block_q, 128), _round_up(Q, 128)))

    # Keep enough grid steps for double buffering (and, on v7x, for the
    # "parallel" axis to give each TensorCore several pipelined steps).
    if min_grid_steps > 1:
        tq = min(tq, max(128, (Q // min_grid_steps) // 128 * 128))

    # Shrink until (double-buffered queue tile + double-buffered logits tile +
    # resident q/k/l_pos + slack for Mosaic-internal scratch) fits the budget.
    def vmem_need(t):
        return (2 * t * D * mem_bytes + 2 * B * t * out_bytes
                + 2 * B * D * 4 + 8 * B + (2 << 20))

    while tq > 128 and vmem_need(tq) > vmem_budget_bytes:
        tq -= 128

    # Prefer a tile that divides Q exactly -> no ragged tail, no masked stores.
    if Q % 128 == 0:
        while Q % tq:
            tq -= 128
    return tq


# ---------------------------------------------------------------------------
# Forward wrapper
# ---------------------------------------------------------------------------
def moco_contrast(q, k, memory, temperature, *, block_q=8192, logits_dtype=None,
                  concat_output=False, vmem_budget_bytes=40 * 1024 * 1024,
                  min_grid_steps=8):
    """MoCo logits.

    Returns (l_pos [B,1] f32, l_neg [B,Q] logits_dtype) by default; with
    concat_output=True returns the torch-identical cat([l_pos, l_neg], 1).
    """
    B, D = q.shape
    Q, D2 = memory.shape
    assert D == D2 and k.shape == (B, D)
    inv_temp = float(1.0 / temperature)

    if logits_dtype is None:
        # Follow the queue precision: bf16 queue -> bf16 logits (halves the
        # dominant [B, Q] writeback); f32 queue -> f32 (exact torch parity).
        md = jnp.dtype(memory.dtype)
        low = (jnp.dtype(jnp.bfloat16), jnp.dtype(jnp.float16))
        logits_dtype = md if md in low else jnp.dtype(jnp.float32)
    logits_dtype = jnp.dtype(logits_dtype)

    tq = _pick_queue_tile(
        Q, D, B, jnp.dtype(memory.dtype).itemsize, logits_dtype.itemsize,
        block_q=block_q, vmem_budget_bytes=vmem_budget_bytes,
        min_grid_steps=min_grid_steps)
    n_tiles = pl.cdiv(Q, tq)

    l_pos, l_neg = pl.pallas_call(
        functools.partial(_moco_fused_kernel, inv_temp=inv_temp),
        out_shape=(jax.ShapeDtypeStruct((B, 1), jnp.float32),
                   jax.ShapeDtypeStruct((B, Q), logits_dtype)),
        grid=(n_tiles,),
        in_specs=[
            pl.BlockSpec((B, D), lambda i: (0, 0)),    # q: resident in VMEM
            pl.BlockSpec((B, D), lambda i: (0, 0)),    # k: resident in VMEM
            pl.BlockSpec((tq, D), lambda i: (i, 0)),   # queue: streamed
        ],
        out_specs=(
            pl.BlockSpec((B, 1), lambda i: (0, 0)),    # l_pos: resident block
            pl.BlockSpec((B, tq), lambda i: (0, i)),   # l_neg: lane-dense tiles
        ),
        compiler_params=pltpu.CompilerParams(
            # Every l_neg block is partitioned by the Q axis and the l_pos
            # block receives identical writes from every step, so sharding the
            # axis across v7x's two TensorCores is safe; near no-op on
            # single-TC v5e/v6e.
            dimension_semantics=("parallel",),
            vmem_limit_bytes=max(32 << 20, int(vmem_budget_bytes) + (8 << 20)),
        ),
    )(q, k, memory)

    if not concat_output:
        return l_pos, l_neg
    # Torch-identical single [B, 1+Q] array; costs one extra [B, Q] HBM
    # read+write, so the tuple form above is the preferred fast path.
    out_dt = jnp.promote_types(l_pos.dtype, l_neg.dtype)
    return jnp.concatenate([l_pos.astype(out_dt), l_neg.astype(out_dt)], axis=1)


# ---------------------------------------------------------------------------
# FIFO queue update (state-mutation glue; in-place via buffer donation)
# ---------------------------------------------------------------------------
@functools.partial(jax.jit, donate_argnums=(0,))
def _queue_write(memory, rows, start):
    return lax.dynamic_update_slice(memory, rows.astype(memory.dtype),
                                    (start, jnp.int32(0)))


@functools.partial(jax.jit, donate_argnums=(0,), static_argnames=("split",))
def _queue_write_wrapped(memory, rows, start, *, split):
    rows = rows.astype(memory.dtype)
    memory = lax.dynamic_update_slice(memory, rows[:split], (start, jnp.int32(0)))
    return lax.dynamic_update_slice(memory, rows[split:],
                                    (jnp.int32(0), jnp.int32(0)))


def moco_queue_update(memory, k_all, index, queue_size):
    """Functional equivalent of memory.index_copy_(0, fmod(arange+idx, Q), k_all).

    The FIFO indices are contiguous modulo Q, so the generic scatter is
    replaced by at most two donated dynamic_update_slice slabs (split at the
    wrap point) -> in-place on TPU, O(B*D) HBM traffic.
    """
    n = k_all.shape[0]
    assert n <= queue_size, "queue update larger than the queue"
    index = int(index) % queue_size
    room = queue_size - index
    if n <= room:
        memory = _queue_write(memory, k_all, jnp.int32(index))
    else:
        # `room` is a Python int -> both slabs have static shapes.  This branch
        # only recompiles when the update size does not divide queue_size.
        memory = _queue_write_wrapped(memory, k_all, jnp.int32(index), split=room)
    return memory, (index + n) % queue_size


# ---------------------------------------------------------------------------
# Module
# ---------------------------------------------------------------------------
class MemoryMoCoJAX:
    """k_shot = 0 (no labeled branch); single-worker semantics."""

    def __init__(self, batch_size, feature_dim, queue_size, temperature=0.07,
                 num_classes=1000, k_shot=0, info_temperature=0.07, seed=0,
                 memory_dtype=jnp.float32):
        # TODO(synk): labeled branch (k_shot > 0) needs torch.distributed
        # collectives (dist_collect / world-size reshape); not implemented.
        assert k_shot == 0, "labeled branch not implemented"
        self.batch_size = batch_size
        self.feature_dim = feature_dim
        self.queue_size = queue_size
        self.temperature = temperature
        self.index = 0
        stdv = 1.0 / math.sqrt(feature_dim / 3)
        key = jax.random.PRNGKey(seed)
        # Deterministic init matching torch.rand(...)*2*stdv - stdv.
        # bf16 storage halves the HBM traffic of the streaming matmul
        # (f32 MXU accumulation); recommended for production queue sizes.
        # TODO(synk): int8 (v5e/v6e) / fp8-e4m3 (v7x) queue storage with
        # per-row scales would further halve queue traffic; not implemented.
        self.memory = jax.random.uniform(
            key, (queue_size, feature_dim), dtype=jnp.float32,
            minval=-stdv, maxval=stdv).astype(memory_dtype)

    def forward(self, q, k, k_all, buffer_idx=None, *, block_q=8192,
                logits_dtype=None, concat_output=False,
                vmem_budget_bytes=40 * 1024 * 1024, min_grid_steps=8):
        k = k[: self.batch_size]
        out = moco_contrast(q, k, self.memory, self.temperature,
                            block_q=block_q, logits_dtype=logits_dtype,
                            concat_output=concat_output,
                            vmem_budget_bytes=vmem_budget_bytes,
                            min_grid_steps=min_grid_steps)
        # no_grad state mutation in the torch module -> in-place donated slabs.
        self.memory, self.index = moco_queue_update(
            self.memory, k_all, self.index, self.queue_size)
        return out


# ---------------------------------------------------------------------------
# References & self-test
# ---------------------------------------------------------------------------
def _reference(q, k, memory, temperature):
    l_pos = jnp.sum(q * k, axis=-1, keepdims=True)
    l_neg = q @ memory.astype(jnp.float32).T
    return jnp.concatenate([l_pos, l_neg], axis=1) / temperature


def _reference_lowp(q, k, memory_lowp, temperature):
    """Pure-JAX model of the bf16-queue / bf16-logits kernel path."""
    inv_t = 1.0 / temperature
    l_pos = jnp.sum(q * k, axis=-1, keepdims=True) * inv_t
    qm = q.astype(memory_lowp.dtype).astype(jnp.float32)
    l_neg = (qm @ memory_lowp.astype(jnp.float32).T) * inv_t
    l_neg = l_neg.astype(memory_lowp.dtype).astype(jnp.float32)
    return jnp.concatenate([l_pos, l_neg], axis=1)


if __name__ == "__main__":
    batch_size, feature_dim, queue_size = 8, 32, 512

    key = jax.random.PRNGKey(0)
    kq, kk, ka = jax.random.split(key, 3)
    q = jax.random.normal(kq, (batch_size, feature_dim), dtype=jnp.float32)
    k = jax.random.normal(kk, (batch_size, feature_dim), dtype=jnp.float32)
    k_all = jax.random.normal(ka, (batch_size, feature_dim), dtype=jnp.float32)

    # ---- f32 queue, tuple output (exact match to the torch math) ----
    moco = MemoryMoCoJAX(batch_size, feature_dim, queue_size,
                         temperature=0.07, k_shot=0, seed=0)
    # Reference uses the pre-update queue; compute it BEFORE forward() because
    # the queue buffer is donated by the in-place FIFO update.
    ref = _reference(q, k, moco.memory, moco.temperature)

    l_pos, l_neg = moco.forward(q, k, k_all)        # tq=128 -> 4 pipelined tiles
    jax.block_until_ready((l_pos, l_neg))

    assert l_pos.shape == (batch_size, 1) and l_pos.dtype == jnp.float32
    assert l_neg.shape == (batch_size, queue_size) and l_neg.dtype == jnp.float32
    out = jnp.concatenate([l_pos, l_neg], axis=1)   # test-side only
    assert jnp.allclose(out, ref, atol=1e-4, rtol=1e-4)
    # FIFO update landed in place (donated dynamic_update_slice slab).
    assert jnp.allclose(moco.memory[:batch_size], k_all)
    assert moco.index == batch_size % queue_size

    # ---- bf16 queue + bf16 logits, torch-style concatenated output ----
    moco16 = MemoryMoCoJAX(batch_size, feature_dim, queue_size,
                           temperature=0.07, k_shot=0, seed=0,
                           memory_dtype=jnp.bfloat16)
    ref16 = _reference_lowp(q, k, moco16.memory, moco16.temperature)
    out16 = moco16.forward(q, k, k_all, concat_output=True)
    jax.block_until_ready(out16)
    assert out16.shape == (batch_size, 1 + queue_size)
    assert out16.dtype == jnp.float32
    assert jnp.allclose(out16, ref16, atol=5e-2, rtol=2e-2)

    print("KERNEL_OK")
</pallas_src>

<mosaic_0001>
module attributes {stable_mosaic.version = 11 : i64} {
  func.func @_moco_fused_kernel(%arg0: i32, %arg1: memref<8x32xf32, #tpu.memory_space<vmem>>, %arg2: memref<8x32xf32, #tpu.memory_space<vmem>>, %arg3: memref<128x32xf32, #tpu.memory_space<vmem>>, %arg4: memref<8x1xf32, #tpu.memory_space<vmem>>, %arg5: memref<8x128xf32, #tpu.memory_space<vmem>>) attributes {dimension_semantics = [#tpu.dimension_semantics<parallel>], iteration_bounds = array<i64: 4>, scalar_prefetch = 0 : i64, scratch_operands = 0 : i64, tpu.core_type = #tpu.core_type<tc>, window_params = [{pipeline_mode = #tpu.pipeline_mode<synchronous>, transform_indices = @transform_0, window_bounds = array<i64: 8, 32>}, {pipeline_mode = #tpu.pipeline_mode<synchronous>, transform_indices = @transform_1, window_bounds = array<i64: 8, 32>}, {transform_indices = @transform_2, window_bounds = array<i64: 128, 32>}, {pipeline_mode = #tpu.pipeline_mode<synchronous>, transform_indices = @transform_3, window_bounds = array<i64: 8, 1>}, {transform_indices = @transform_4, window_bounds = array<i64: 8, 128>}]} {
    %c0 = arith.constant 0 : index
    %c0_0 = arith.constant 0 : index
    %0 = vector.load %arg1[%c0, %c0_0] : memref<8x32xf32, #tpu.memory_space<vmem>>, vector<8x32xf32>
    %c0_1 = arith.constant 0 : index
    %c0_2 = arith.constant 0 : index
    %1 = vector.load %arg2[%c0_1, %c0_2] : memref<8x32xf32, #tpu.memory_space<vmem>>, vector<8x32xf32>
    %2 = arith.mulf %0, %1 : vector<8x32xf32>
    %cst = arith.constant dense<0.000000e+00> : vector<8xf32>
    %3 = vector.multi_reduction <add>, %2, %cst [1] : vector<8x32xf32> to vector<8xf32>
    %4 = vector.shape_cast %3 : vector<8xf32> to vector<8x1xf32>
    %cst_3 = arith.constant 14.2857141 : f32
    %5 = vector.broadcast %cst_3 : f32 to vector<8x1xf32>
    %6 = arith.mulf %4, %5 : vector<8x1xf32>
    %c0_4 = arith.constant 0 : index
    %c0_5 = arith.constant 0 : index
    %7 = vector.load %arg4[%c0_4, %c0_5] : memref<8x1xf32, #tpu.memory_space<vmem>>, vector<8x1xf32>
    tpu.vector_store %arg4[%c0_4, %c0_5], %6 {strides = array<i32>} : memref<8x1xf32, #tpu.memory_space<vmem>>, vector<8x1xf32>,
    %c0_6 = arith.constant 0 : index
    %c0_7 = arith.constant 0 : index
    %8 = vector.load %arg1[%c0_6, %c0_7] : memref<8x32xf32, #tpu.memory_space<vmem>>, vector<8x32xf32>
    %c0_8 = arith.constant 0 : index
    %c0_9 = arith.constant 0 : index
    %9 = vector.load %arg3[%c0_8, %c0_9] : memref<128x32xf32, #tpu.memory_space<vmem>>, vector<128x32xf32>
    %cst_10 = arith.constant dense<0.000000e+00> : vector<8x128xf32>
    %10 = tpu.matmul %8, %9, %cst_10 {dimension_numbers = #tpu.dot_dimension_numbers<[1], [1], [0], [0], [0, 0, 1, 0], [], []>} : vector<8x32xf32>, vector<128x32xf32>, vector<8x128xf32> -> vector<8x128xf32>
    %cst_11 = arith.constant 14.2857141 : f32
    %11 = vector.broadcast %cst_11 : f32 to vector<8x128xf32>
    %12 = arith.mulf %10, %11 : vector<8x128xf32>
    %c0_12 = arith.constant 0 : index
    %c0_13 = arith.constant 0 : index
    %13 = vector.load %arg5[%c0_12, %c0_13] : memref<8x128xf32, #tpu.memory_space<vmem>>, vector<8x128xf32>
    tpu.vector_store %arg5[%c0_12, %c0_13], %12 {strides = array<i32>} : memref<8x128xf32, #tpu.memory_space<vmem>>, vector<8x128xf32>,
    return
  }
  func.func @transform_0(%arg0: i32) -> (i32, i32) {
    %c0_i32 = arith.constant 0 : i32
    %c0_i32_0 = arith.constant 0 : i32
    %c0_i32_1 = arith.constant 0 : i32
    return %c0_i32, %c0_i32_0 : i32, i32
  }
  func.func @transform_1(%arg0: i32) -> (i32, i32) {
    %c0_i32 = arith.constant 0 : i32
    %c0_i32_0 = arith.constant 0 : i32
    %c0_i32_1 = arith.constant 0 : i32
    return %c0_i32, %c0_i32_0 : i32, i32
  }
  func.func @transform_2(%arg0: i32) -> (i32, i32) {
    %c0_i32 = arith.constant 0 : i32
    %c0_i32_0 = arith.constant 0 : i32
    return %arg0, %c0_i32 : i32, i32
  }
  func.func @transform_3(%arg0: i32) -> (i32, i32) {
    %c0_i32 = arith.constant 0 : i32
    %c0_i32_0 = arith.constant 0 : i32
    %c0_i32_1 = arith.constant 0 : i32
    return %c0_i32, %c0_i32_0 : i32, i32
  }
  func.func @transform_4(%arg0: i32) -> (i32, i32) {
    %c0_i32 = arith.constant 0 : i32
    %c0_i32_0 = arith.constant 0 : i32
    return %c0_i32, %arg0 : i32, i32
  }
}

</mosaic_0001>

<llo_original>
// kernel: tpu_custom_call.1
$region0: #{tpu_custom_call.1}
  #allocation0 [shape = 'u32[]', space=smem, size = 0x4, offset = 0x4, fixed_abs, tag = 'smem constant byte address 0x4 - core index']
  #allocation1 [shape = 'u32[144,128]{1,0:T(1,128)}', space=vmem, size = 0x12000, scoped, tag = 'internal scratch']
  %s0 = inlined_call_operand.vmem [shape: f32[8,32], index: 0, kind: input, shape index: {}]
  %s1 = inlined_call_operand.vmem [shape: f32[8,32], index: 1, kind: input, shape index: {}]
  %s2 = inlined_call_operand.vmem [shape: f32[512,32], index: 2, kind: input, shape index: {}]
  %s3 = inlined_call_operand.vmem [shape: f32[8,1], index: 3, kind: output, shape index: {0}]
  %s4 = inlined_call_operand.hbm [shape: f32[8,512], index: 4, kind: output, shape index: {1}]
  %5 = xla_tuple %s3, %s4
  %s6 = sld [smem:[#allocation0]]
  $region53: #{tpu_custom_call.1} parent=0
    _
  %s8 = ssub.s32 1, %s6
  %s9 = scalar_select 0, %s8, %s6
  $region1: #{tpu_custom_call.1} parent=0
    #allocation2 [shape = 'u8[8192]{0}', space=vmem, size = 0x2000, scoped, tag = 'output window, operand 1']
    #allocation3 [shape = 's32[2]{0}', space=sflag, size = 0x8, scoped, tag = 'scoped memory for tpu_custom_call.1']
    %10 = vsyncpa [#allocation3], 0
    %s11 = scalar_lea.sflag [#allocation3], 1
    %12 = vsyncpa %s11, 0
    loop: start=0, step=1, limit=6
    $region2: #{tpu_custom_call.1} parent=1 // loop_pre_header
      _
    $region3: #{tpu_custom_call.1} parent=1 // loop_header
      %s14 = sphi 0, %s18
      %p15 = scmp.ge.s32.totalorder %s14, 6
      %s22 = sphi 0, %s22
      %s24 = sphi 0, %s22
      %s25 = sphi 0, %s24
      %s39 = sphi 0, %s25
      %s43 = sphi 0, %s43
      %s45 = sphi 0, %s43
      %s46 = sphi 0, %s45
      %s60 = sphi 0, %s46
      %s66 = sphi 0, %s68
      %s69 = sphi 0, %s66
      %s70 = sphi 0, %s69
      %s86 = sphi 0, %s70
      %s90 = sphi 0, %s90
      %s92 = sphi 0, %s90
      %s93 = sphi 0, %s92
      %s107 = sphi 0, %s93
      %s113 = sphi 0, %s115
      %s116 = sphi 0, %s113
      %s117 = sphi 0, %s116
      %s133 = sphi 0, %s117
    $region4: #{tpu_custom_call.1} parent=1 // loop_header_branch
      %17 = sbr.rel (%p15) target = $region8
    $region5: #{tpu_custom_call.1} parent=1 // loop_body
      %s19 = ssub.s32 %s14, 1
      %s20 = ssub.s32 %s14, 2
      %s21 = sadd.s32 %s14, 1
      %s23 = sadd.s32 %s22, 1
      %p26 = scmp.eq.s32.totalorder %s14, 3
      %p27 = scmp.ne.s32.totalorder %s22, %s24
      %p28 = scmp.eq.s32.totalorder %s14, 0
      %p29 = por %p27, %p28
      %p30 = scmp.ne.s32.totalorder %s22, %s24
      %p31 = scmp.eq.s32.totalorder %s19, 3
      %p32 = por %p30, %p31
      %p33 = scmp.ne.s32.totalorder %s24, %s25
      %p34 = scmp.eq.s32.totalorder %s19, 0
      %p35 = por %p33, %p34
      %p36 = scmp.ne.s32.totalorder %s24, %s25
      %p37 = scmp.eq.s32.totalorder %s20, 3
      %p38 = por %p36, %p37
      %p40 = scmp.ne.s32.totalorder %s25, %s39
      %p41 = scmp.eq.s32.totalorder %s20, 0
      %p42 = por %p40, %p41
      %s44 = sadd.s32 %s43, 1
      %p47 = scmp.eq.s32.totalorder %s14, 3
      %p48 = scmp.ne.s32.totalorder %s43, %s45
      %p49 = scmp.eq.s32.totalorder %s14, 0
      %p50 = por %p48, %p49
      %p51 = scmp.ne.s32.totalorder %s43, %s45
      %p52 = scmp.eq.s32.totalorder %s19, 3
      %p53 = por %p51, %p52
      %p54 = scmp.ne.s32.totalorder %s45, %s46
      %p55 = scmp.eq.s32.totalorder %s19, 0
      %p56 = por %p54, %p55
      %p57 = scmp.ne.s32.totalorder %s45, %s46
      %p58 = scmp.eq.s32.totalorder %s20, 3
      %p59 = por %p57, %p58
      %p61 = scmp.ne.s32.totalorder %s46, %s60
      %p62 = scmp.eq.s32.totalorder %s20, 0
      %p63 = por %p61, %p62
      %s64 = ssub.s32 %s14, %s21
      %p65 = scmp.eq.s32.totalorder %s64, 0
      %s67 = sadd.s32 %s66, 1
      %s68 = scalar_select %p65, %s66, %s67
      %p71 = pneg %p65
      %p72 = scmp.eq.s32.totalorder %s14, 3
      %p73 = por %p71, %p72
      %p74 = scmp.ne.s32.totalorder %s66, %s69
      %p75 = scmp.eq.s32.totalorder %s14, 0
      %p76 = por %p74, %p75
      %p77 = scmp.ne.s32.totalorder %s66, %s69
      %p78 = scmp.eq.s32.totalorder %s19, 3
      %p79 = por %p77, %p78
      %p80 = scmp.ne.s32.totalorder %s69, %s70
      %p81 = scmp.eq.s32.totalorder %s19, 0
      %p82 = por %p80, %p81
      %p83 = scmp.ne.s32.totalorder %s69, %s70
      %p84 = scmp.eq.s32.totalorder %s20, 3
      %p85 = por %p83, %p84
      %p87 = scmp.ne.s32.totalorder %s70, %s86
      %p88 = scmp.eq.s32.totalorder %s20, 0
      %p89 = por %p87, %p88
      %s91 = sadd.s32 %s90, 1
      %p94 = scmp.eq.s32.totalorder %s14, 3
      %p95 = scmp.ne.s32.totalorder %s90, %s92
      %p96 = scmp.eq.s32.totalorder %s14, 0
      %p97 = por %p95, %p96
      %p98 = scmp.ne.s32.totalorder %s90, %s92
      %p99 = scmp.eq.s32.totalorder %s19, 3
      %p100 = por %p98, %p99
      %p101 = scmp.ne.s32.totalorder %s92, %s93
      %p102 = scmp.eq.s32.totalorder %s19, 0
      %p103 = por %p101, %p102
      %p104 = scmp.ne.s32.totalorder %s92, %s93
      %p105 = scmp.eq.s32.totalorder %s20, 3
      %p106 = por %p104, %p105
      %p108 = scmp.ne.s32.totalorder %s93, %s107
      %p109 = scmp.eq.s32.totalorder %s20, 0
      %p110 = por %p108, %p109
      %s111 = ssub.s32 %s14, %s21
      %p112 = scmp.eq.s32.totalorder %s111, 0
      %s114 = sadd.s32 %s113, 1
      %s115 = scalar_select %p112, %s113, %s114
      %p118 = pneg %p112
      %p119 = scmp.eq.s32.totalorder %s14, 3
      %p120 = por %p118, %p119
      %p121 = scmp.ne.s32.totalorder %s113, %s116
      %p122 = scmp.eq.s32.totalorder %s14, 0
      %p123 = por %p121, %p122
      %p124 = scmp.ne.s32.totalorder %s113, %s116
      %p125 = scmp.eq.s32.totalorder %s19, 3
      %p126 = por %p124, %p125
      %p127 = scmp.ne.s32.totalorder %s116, %s117
      %p128 = scmp.eq.s32.totalorder %s19, 0
      %p129 = por %p127, %p128
      %p130 = scmp.ne.s32.totalorder %s116, %s117
      %p131 = scmp.eq.s32.totalorder %s20, 3
      %p132 = por %p130, %p131
      %p134 = scmp.ne.s32.totalorder %s117, %s133
      %p135 = scmp.eq.s32.totalorder %s20, 0
      %p136 = por %p134, %p135
      %p137 = scmp.le.s32.totalorder 1, %s14
      %p138 = scmp.lt.s32.totalorder %s14, 5
      %p139 = pnand %p137, %p138
      %p140 = pneg %p139
      // Predicated region
      $region9: #{tpu_custom_call.1} parent=5 // pred_check
        _
      $region10: #{tpu_custom_call.1} parent=5 // pred_check_branch
        %142 = sbr.rel (%p139) target = $region12
      $region11: #{tpu_custom_call.1} parent=5 // pred_region
        %s143 = ssub.s32 %s14, 1
        // Predicated region
        $region13: #{tpu_custom_call.1} parent=11 // pred_check
          %p144 = pneg %p35
        $region14: #{tpu_custom_call.1} parent=11 // pred_check_branch
          %146 = sbr.rel (%p144) target = $region16
        $region15: #{tpu_custom_call.1} parent=11 // pred_region
          _
        $region16: #{tpu_custom_call.1} parent=11 // pred_fallthru
          _
        // Predicated region
        $region17: #{tpu_custom_call.1} parent=11 // pred_check
          %p147 = pneg %p56
        $region18: #{tpu_custom_call.1} parent=11 // pred_check_branch
          %149 = sbr.rel (%p147) target = $region20
        $region19: #{tpu_custom_call.1} parent=11 // pred_region
          _
        $region20: #{tpu_custom_call.1} parent=11 // pred_fallthru
          _
      $region12: #{tpu_custom_call.1} parent=5 // pred_fallthru
        _
      %p150 = scmp.lt.s32.totalorder %s14, 4
      // Predicated region
      $region21: #{tpu_custom_call.1} parent=5 // pred_check
        %p151 = pneg %p150
      $region22: #{tpu_custom_call.1} parent=5 // pred_check_branch
        %153 = sbr.rel (%p151) target = $region24
      $region23: #{tpu_custom_call.1} parent=5 // pred_region
        // Predicated region
        $region25: #{tpu_custom_call.1} parent=23 // pred_check
          %p154 = pneg %p76
        $region26: #{tpu_custom_call.1} parent=23 // pred_check_branch
          %156 = sbr.rel (%p154) target = $region28
        $region27: #{tpu_custom_call.1} parent=23 // pred_region
          %s157 = smul.u32 16, %s14
          %p158 = scmp.lt.s32.totalorder %s157, 63
          %s159 = scalar_select %p158, %s157, 63
          %s160 = smul.addr %s159, 8
          %s161 = scalar_lea.vmem %s2, %s160
          %s162 = smul.u32 16, %s14
        $region28: #{tpu_custom_call.1} parent=23 // pred_fallthru
          _
      $region24: #{tpu_custom_call.1} parent=5 // pred_fallthru
        _
      %p163 = scmp.le.s32.totalorder 1, %s14
      %p164 = scmp.lt.s32.totalorder %s14, 5
      %p165 = pnand %p163, %p164
      %p166 = pneg %p165
      // Predicated region
      $region29: #{tpu_custom_call.1} parent=5 // pred_check
        _
      $region30: #{tpu_custom_call.1} parent=5 // pred_check_branch
        %168 = sbr.rel (%p165) target = $region32
      $region31: #{tpu_custom_call.1} parent=5 // pred_region
        %s169 = ssub.s32 %s14, 1
        %p170 = pneg %p35
        %p171 = pneg %p32
        %p172 = pneg %p56
        %p173 = pneg %p53
        %s174 = smul.u32 16, %s19
        %p175 = scmp.lt.s32.totalorder %s174, 63
        %s176 = scalar_select %p175, %s174, 63
        %s177 = smul.addr %s176, 8
        %s178 = scalar_lea.vmem %s2, %s177
        %p179 = pneg %p82
        %p180 = pneg %p79
        %p181 = pneg %p103
        %p182 = pneg %p100
        %p183 = pneg %p129
        %p184 = pneg %p126
        %s185 = sand.u32 %s116, 1
        %s186 = scalar_lea.sflag [#allocation3], %s185
        %s187 = sand.u32 %s116, 1
        %s188 = smul.addr %s187, 8
        %s189 = scalar_lea.vmem [#allocation2], %s188
        %s190 = smul.u32 16, %s19
        %p191 = scmp.lt.s32.totalorder %s190, 63
        %s192 = scalar_select %p191, %s190, 63
        %s193 = smul.addr %s192, 8
        %s194 = scalar_lea.vmem %s2, %s193
        %s195 = smul.u32 16, %s19
        %v196 = vld [vmem:[%s0] sm:$0xff]
        %v197 = vld [vmem:[%s1] sm:$0xff]
        %v198 = vmul.f32 %v196, %v197
        %vm199 = vcmask 261120
        %v200 = vsel %vm199, %v198, 0.0
        %201 = vadd.xlane.f32.xlu0 %v200
        %v202 = vpop.xlane.xlu0 %201
        %v203 = vmul.f32 %v202, 14.285714
        %vm204 = vcmask 7168
        %205 = vst.msk [vmem:[%s3] sm:$0xff] %vm204, %v203
        %v206 = vld [vmem:[%s0] sm:$0xff]
        %v207 = vld [vmem:[%s194] sm:$0xff]
        %v208 = vld [vmem:[%s194 + $0x8] sm:$0xff]
        %v209 = vld [vmem:[%s194 + $0x10] sm:$0xff]
        %v210 = vld [vmem:[%s194 + $0x18] sm:$0xff]
        %v211 = vld [vmem:[%s194 + $0x20] sm:$0xff]
        %v212 = vld [vmem:[%s194 + $0x28] sm:$0xff]
        %v213 = vld [vmem:[%s194 + $0x30] sm:$0xff]
        %v214 = vld [vmem:[%s194 + $0x38] sm:$0xff]
        %v215 = vld [vmem:[%s194 + $0x40] sm:$0xff]
        %v216 = vld [vmem:[%s194 + $0x48] sm:$0xff]
        %v217 = vld [vmem:[%s194 + $0x50] sm:$0xff]
        %v218 = vld [vmem:[%s194 + $0x58] sm:$0xff]
        %v219 = vld [vmem:[%s194 + $0x60] sm:$0xff]
        %v220 = vld [vmem:[%s194 + $0x68] sm:$0xff]
        %v221 = vld [vmem:[%s194 + $0x70] sm:$0xff]
        %v222 = vld [vmem:[%s194 + $0x78] sm:$0xff]
        %v224 = vsel %vm199, %v206, 0
        %v227 = vsel %vm199, %v207, 0
        %v230 = vsel %vm199, %v208, 0
        %v233 = vsel %vm199, %v209, 0
        %v236 = vsel %vm199, %v210, 0
        %v239 = vsel %vm199, %v211, 0
        %v242 = vsel %vm199, %v212, 0
        %v245 = vsel %vm199, %v213, 0
        %v248 = vsel %vm199, %v214, 0
        %v251 = vsel %vm199, %v215, 0
        %v254 = vsel %vm199, %v216, 0
        %v257 = vsel %vm199, %v217, 0
        %v260 = vsel %vm199, %v218, 0
        %v263 = vsel %vm199, %v219, 0
        %v266 = vsel %vm199, %v220, 0
        %v269 = vsel %vm199, %v221, 0
        %v272 = vsel %vm199, %v222, 0
        %274 = vmatprep.subr.mxu0 0.0
        %275 = vmatpush1.xpose.msra.mxu0 %v272
        %276 = vmatprep.subr.mxu0 0.0
        %277 = vmatpush1.xpose.msra.mxu0 %v269
        %278 = vmatprep.subr.mxu0 0.0
        %279 = vmatpush1.xpose.msra.mxu0 %v266
        %280 = vmatprep.subr.mxu0 0.0
        %281 = vmatpush1.xpose.msra.mxu0 %v263
        %282 = vmatprep.subr.mxu0 0.0
        %283 = vmatpush1.xpose.msra.mxu0 %v260
        %284 = vmatprep.subr.mxu0 0.0
        %285 = vmatpush1.xpose.msra.mxu0 %v257
        %286 = vmatprep.subr.mxu0 0.0
        %287 = vmatpush1.xpose.msra.mxu0 %v254
        %288 = vmatprep.subr.mxu0 0.0
        %289 = vmatpush1.xpose.msra.mxu0 %v251
        %290 = vmatprep.subr.mxu0 0.0
        %291 = vmatpush1.xpose.msra.mxu0 %v248
        %292 = vmatprep.subr.mxu0 0.0
        %293 = vmatpush1.xpose.msra.mxu0 %v245
        %294 = vmatprep.subr.mxu0 0.0
        %295 = vmatpush1.xpose.msra.mxu0 %v242
        %296 = vmatprep.subr.mxu0 0.0
        %297 = vmatpush1.xpose.msra.mxu0 %v239
        %298 = vmatprep.subr.mxu0 0.0
        %299 = vmatpush1.xpose.msra.mxu0 %v236
        %300 = vmatprep.subr.mxu0 0.0
        %301 = vmatpush1.xpose.msra.mxu0 %v233
        %302 = vmatprep.subr.mxu0 0.0
        %303 = vmatpush1.xpose.msra.mxu0 %v230
        %304 = vmatprep.subr.mxu0 0.0
        %305 = vmatpush1.xpose.msra.mxu0 %v227
        %306 = vmatprep.subr.mxu0 0.0
        %307 = vmatpush2.xpose.msra.mxu0 0.0
        %308 = vmatprep.subr.mxu0 0.0
        %309 = vmatpush2.xpose.msra.mxu0 0.0
        %310 = vmatprep.subr.mxu0 0.0
        %311 = vmatpush2.xpose.msra.mxu0 0.0
        %312 = vmatprep.subr.mxu0 0.0
        %313 = vmatpush2.xpose.msra.mxu0 0.0
        %314 = vmatprep.subr.mxu0 0.0
        %315 = vmatpush2.xpose.msra.mxu0 0.0
        %316 = vmatprep.subr.mxu0 0.0
        %317 = vmatpush2.xpose.msra.mxu0 0.0
        %318 = vmatprep.subr.mxu0 0.0
        %319 = vmatpush2.xpose.msra.mxu0 0.0
        %320 = vmatprep.subr.mxu0 0.0
        %321 = vmatpush2.xpose.msra.mxu0 0.0
        %322 = vmatprep.subr.mxu0 0.0
        %323 = vmatpush2.xpose.msra.mxu0 0.0
        %324 = vmatprep.subr.mxu0 0.0
        %325 = vmatpush2.xpose.msra.mxu0 0.0
        %326 = vmatprep.subr.mxu0 0.0
        %327 = vmatpush2.xpose.msra.mxu0 0.0
        %328 = vmatprep.subr.mxu0 0.0
        %329 = vmatpush2.xpose.msra.mxu0 0.0
        %330 = vmatprep.subr.mxu0 0.0
        %331 = vmatpush2.xpose.msra.mxu0 0.0
        %332 = vmatprep.subr.mxu0 0.0
        %333 = vmatpush2.xpose.msra.mxu0 0.0
        %334 = vmatprep.subr.mxu0 0.0
        %335 = vmatpush2.xpose.msra.mxu0 0.0
        %336 = vmatprep.subr.mxu0 0.0
        %337 = vmatpush2.xpose.msra.mxu0 0.0
        %338 = vmatprep.mubr.f32.mxu0 0.0
        %339 = vmatmul.mubr.f32.gmra.mxu0 %v224
        %v340 = vpop.f32.mrf.mxu0
        %v341 = vadd.f32 0.0, %v340
        %v342 = vpop.f32.mrf.mxu0
        %343 = vdwg.mxu0
        %v344 = vmul.f32 %v341, 14.285714
        %345 = vst [vmem:[%s189] sm:$0xff] %v344
        %s346 = sand.u32 %s116, 1
        %s347 = scalar_lea.sflag [#allocation3], %s346
        %s348 = sand.u32 %s116, 1
        %s349 = smul.addr %s348, 8
        %s350 = scalar_lea.vmem [#allocation2], %s349
        // Predicated region
        $region33: #{tpu_custom_call.1} parent=31 // pred_check
          %p351 = pneg %p100
        $region34: #{tpu_custom_call.1} parent=31 // pred_check_branch
          %353 = sbr.rel (%p351) target = $region36
        $region35: #{tpu_custom_call.1} parent=31 // pred_region
          _
        $region36: #{tpu_custom_call.1} parent=31 // pred_fallthru
          _
        // Predicated region
        $region37: #{tpu_custom_call.1} parent=31 // pred_check
          %p354 = pneg %p126
        $region38: #{tpu_custom_call.1} parent=31 // pred_check_branch
          %356 = sbr.rel (%p354) target = $region40
        $region39: #{tpu_custom_call.1} parent=31 // pred_region
          %s358 = ssub.s32 128, 128
          %359 = vsyncadd %s347, %s358
          %s360 = smul.addr %s19, 128
          %s361 = scalar_lea.hbm %s4, %s360
          %s363 = sshll.u32 %s350, 4
          %s364 = int_to_ptr.vmem [resolvable:$true] %s363
          %366 = dma.vmem_to_hbm [thread:$0]  %s364, 128, %s361, %s347
        $region40: #{tpu_custom_call.1} parent=31 // pred_fallthru
          _
        // Predicated region
        $region41: #{tpu_custom_call.1} parent=31 // pred_check
          %p367 = pneg %p100
        $region42: #{tpu_custom_call.1} parent=31 // pred_check_branch
          %369 = sbr.rel (%p367) target = $region44
        $region43: #{tpu_custom_call.1} parent=31 // pred_region
          _
        $region44: #{tpu_custom_call.1} parent=31 // pred_fallthru
          _
      $region32: #{tpu_custom_call.1} parent=5 // pred_fallthru
        _
      %p370 = scmp.le.s32.totalorder 2, %s14
      // Predicated region
      $region45: #{tpu_custom_call.1} parent=5 // pred_check
        %p371 = pneg %p370
      $region46: #{tpu_custom_call.1} parent=5 // pred_check_branch
        %373 = sbr.rel (%p371) target = $region48
      $region47: #{tpu_custom_call.1} parent=5 // pred_region
        %s374 = ssub.s32 %s14, 2
        // Predicated region
        $region49: #{tpu_custom_call.1} parent=47 // pred_check
          %p375 = pneg %p132
        $region50: #{tpu_custom_call.1} parent=47 // pred_check_branch
          %377 = sbr.rel (%p375) target = $region52
        $region51: #{tpu_custom_call.1} parent=47 // pred_region
          %s378 = sand.u32 %s117, 1
          %s379 = scalar_lea.sflag [#allocation3], %s378
          %s380 = sand.u32 %s117, 1
          %s381 = smul.addr %s380, 8
          %s382 = scalar_lea.vmem [#allocation2], %s381
          %383 = dma.done %s379, 128
        $region52: #{tpu_custom_call.1} parent=47 // pred_fallthru
          _
      $region48: #{tpu_custom_call.1} parent=5 // pred_fallthru
        _
    $region6: #{tpu_custom_call.1} parent=1 // loop_footer
      %s18 = sadd.s32 1, %s14
    $region7: #{tpu_custom_call.1} parent=1 // loop_footer_branch
      %13 = sbr.rel target = $region3
    $region8: #{tpu_custom_call.1} parent=1 // loop_exit
      _
    %384 = vsyncpa [#allocation3], 1
    %s385 = scalar_lea.sflag [#allocation3], 1
    %386 = vsyncpa %s385, 1

</llo_original>
